<compile_context>
chip_gen: v6e
topology: v6e:2x2x1
jax: 0.10.0
libtpu: 0.0.40
codegen_flags: <defaults>
</compile_context>

<pallas_src>
import numpy as np
import jax
import jax.numpy as jnp
from jax import lax
from jax.experimental import pallas as pl
from jax.experimental.pallas import tpu as pltpu  # noqa: F401  (TPU backend)

# Problem sizes.  Net(batch_size=N) has lin.in_features = 8 * N, which only
# type-checks when C2 * (H//2) * (W//2) == 8 * N  ->  N = 16, H = W = 8.
N = 16            # batch
H = W = 8         # spatial
C0, C1, C2 = 1, 4, 8
KS, PAD = 5, 2    # conv kernel size / 'same' padding
Hp, Wp = H // 2, W // 2
Hpad, Wpad = H + 2 * PAD, W + 2 * PAD          # 12, 12
FEAT = C2 * Hp * Wp                            # 128 == 8 * N
NOUT = 10
NOUT_PAD = 128                                 # lane-dense output block
SLOPE = 0.01                                   # LeakyReLU negative slope

WC1 = Wpad * C1        # 48: real conv1-output cols = (padded spatial col, chan)
WC1P = 64              # conv1-output cols padded 48->64 for lane-aligned slabs
WC2 = W * C2           # 64: conv2-output cols = (spatial col, chan)
PC2 = (W - 1) * C2     # 56: cols after the horizontal pooling maximum
K2 = KS * WC1P         # 320: fused conv2 contraction depth


def _leaky(x):
    return jnp.where(x > 0, x, SLOPE * x)


def net_kernel(lhs1_ref, w1t_ref, b1w_ref, w2t_ref, b2w_ref, wl_ref, bl_ref,
               out_ref):
    # ---- conv1 + LeakyReLU: ONE bf16 MXU matmul (128,60)@(60,64), f32 acc --
    # rows = (i, n), cols = (w_pad, c1) + 16 zero pad cols.  Horizontal 'same'
    # padding of the conv1 *output* is baked into zero weight/bias columns so
    # conv2 sees its padded input directly (border cols stay exactly 0).
    a1 = _leaky(jnp.dot(lhs1_ref[...], w1t_ref[...],
                        preferred_element_type=jnp.float32) + b1w_ref[...])
    a1b = a1.astype(jnp.bfloat16)                             # dot operand only

    # vertical 'same' padding: PAD*N zero rows on each side (sublane concat).
    zrows = jnp.zeros((PAD * N, WC1P), jnp.bfloat16)
    a1p = jnp.concatenate([zrows, a1b, zrows], axis=0)        # (Hpad*N, 64)

    # ---- conv2 + LeakyReLU: ONE fused (128,320)@(320,64) bf16 MXU matmul ---
    # The 5 vertical taps become 64-lane-aligned slabs concatenated along K;
    # horizontal taps are already folded into the banded weight.
    lhs2 = jnp.concatenate(
        [a1p[dy * N:dy * N + H * N, :] for dy in range(KS)], axis=1)
    a2 = _leaky(jnp.dot(lhs2, w2t_ref[...],
                        preferred_element_type=jnp.float32) + b2w_ref[...])

    # ---- 2x2 max-pool (f32 VALU math) --------------------------------------
    # vertical pairs: rows are i*N + n -> two adjacent aligned 16-row slabs.
    a2r = a2.reshape(Hp, 2 * N, WC2)
    pv = jnp.maximum(a2r[:, :N, :], a2r[:, N:, :])            # (Hp, N, 64)
    # horizontal pairs: cols are j*C2 + c; maximum with the 8-lane-shifted
    # slice.  Only even-j column groups hold valid pooled values; odd-j
    # groups are junk and are zero-weighted in the linear weight.
    ph = jnp.maximum(pv[:, :, :PC2], pv[:, :, C2:])           # (Hp, N, 56)
    phb = ph.astype(jnp.bfloat16)

    # ---- linear: 4 accumulated bf16 matmuls into a lane-dense (16,128) block
    acc = jnp.zeros((N, NOUT_PAD), jnp.float32) + bl_ref[...]
    for ip in range(Hp):
        acc = acc + jnp.dot(phb[ip], wl_ref[ip],
                            preferred_element_type=jnp.float32)
    out_ref[...] = acc


# ---------------------------------------------------------------------------
# One-time (per weight set) host-side parameter packing.  Kept OFF the
# per-call jitted path: at ~5.6 MFLOP the whole net is overhead-bound, and
# these gathers cost as much as the kernel itself if re-run every forward.
# ---------------------------------------------------------------------------
def _banded_conv1_weight(conv1_w):
    # W1T[(dy, w), (w_out, c1)] = conv1_w[c1, 0, dy, w - w_out + PAD] when the
    # tap is in range and w_out is an interior column, else 0; cols padded to 64.
    w1_k = np.transpose(conv1_w[:, 0], (1, 2, 0))             # (dy, dx, c1)
    dy = np.arange(KS)[:, None, None, None]
    w = np.arange(Wpad)[None, :, None, None]
    wo = np.arange(Wpad)[None, None, :, None]
    c1 = np.arange(C1)[None, None, None, :]
    dx = w - wo + PAD
    valid = ((dx >= 0) & (dx < KS) & (wo >= PAD) & (wo < PAD + W))
    w1t = w1_k[dy, np.clip(dx, 0, KS - 1), c1] * valid.astype(np.float32)
    w1t = w1t.reshape(KS * Wpad, WC1)
    return np.pad(w1t, ((0, 0), (0, WC1P - WC1)))             # (60, 64)


def _banded_conv2_weight(conv2_w):
    # W2T[dy, (w, ci), (j, co)] = conv2_w[co, ci, dy, w - j] for 0 <= w-j < KS;
    # the 5 dy blocks are stacked along K (row-padded 48->64 each) to match the
    # 64-wide a1 slabs of the fused conv2 matmul.
    w2_k = np.transpose(conv2_w, (2, 3, 1, 0))                # (dy, dx, ci, co)
    dy = np.arange(KS)[:, None, None, None, None]
    w = np.arange(Wpad)[None, :, None, None, None]
    ci = np.arange(C1)[None, None, :, None, None]
    j = np.arange(W)[None, None, None, :, None]
    co = np.arange(C2)[None, None, None, None, :]
    dx = w - j
    valid = ((dx >= 0) & (dx < KS))
    w2t = w2_k[dy, np.clip(dx, 0, KS - 1), ci, co] * valid.astype(np.float32)
    w2t = w2t.reshape(KS, WC1, WC2)
    w2t = np.pad(w2t, ((0, 0), (0, WC1P - WC1), (0, 0)))      # (5, 64, 64)
    return w2t.reshape(K2, WC2)                               # (320, 64)


def _pool_linear_weight(lin_w):
    # wl[ip, (j, co), o] = lin_w[o, co*Hp*Wp + ip*Wp + j//2] for even j, else 0
    # (odd-j columns of the pooled matrix hold junk and are masked out here).
    lw_r = lin_w.reshape(NOUT, C2, Hp, Wp)
    ip = np.arange(Hp)[:, None, None, None]
    j = np.arange(W - 1)[None, :, None, None]
    co = np.arange(C2)[None, None, :, None]
    o = np.arange(NOUT)[None, None, None, :]
    even = (j % 2 == 0)
    wl = lw_r[o, co, ip, j // 2] * even.astype(np.float32)    # (Hp, 7, C2, 10)
    wl = wl.reshape(Hp, PC2, NOUT)
    return np.pad(wl, ((0, 0), (0, 0), (0, NOUT_PAD - NOUT)))  # (4, 56, 128)


def prepare_packed_params(params):
    """Pack the PyTorch parameters into the kernel's banded/padded operands.
    Runs once per weight set on host numpy (weights -> bf16, biases -> f32)."""
    conv1_w, conv1_b, conv2_w, conv2_b, lin_w, lin_b = (
        np.asarray(p, np.float32) for p in params)

    w1t = jnp.asarray(_banded_conv1_weight(conv1_w), jnp.bfloat16)   # (60, 64)
    interior = ((np.arange(Wpad) >= PAD) & (np.arange(Wpad) < PAD + W))
    b1w = np.pad((interior.astype(np.float32)[:, None]
                  * conv1_b[None, :]).reshape(1, WC1),
                 ((0, 0), (0, WC1P - WC1)))
    b1w = jnp.asarray(b1w, jnp.float32)                              # (1, 64)

    w2t = jnp.asarray(_banded_conv2_weight(conv2_w), jnp.bfloat16)   # (320, 64)
    b2w = jnp.asarray(np.tile(conv2_b, W).reshape(1, WC2), jnp.float32)

    wl = jnp.asarray(_pool_linear_weight(lin_w), jnp.bfloat16)       # (4,56,128)
    bl = jnp.asarray(np.pad(lin_b, (0, NOUT_PAD - NOUT)).reshape(1, NOUT_PAD),
                     jnp.float32)
    return (w1t, b1w, w2t, b2w, wl, bl)


@jax.jit
def net_forward(x, packed):
    """x: (N, 1, H, W) float32 NCHW; packed = prepare_packed_params(params)."""
    if x.shape != (N, C0, H, W):
        raise ValueError(
            f"layout hard-codes batch={N}, spatial={H}x{W}; got {x.shape}")
    w1t, b1w, w2t, b2w, wl, bl = packed

    # x-dependent conv1 row-im2col (the only per-call wrapper work):
    # rows (i, n), cols (dy, w) over the zero-padded input.
    xp = jnp.pad(jnp.transpose(x[:, 0], (1, 2, 0)),
                 ((PAD, PAD), (PAD, PAD), (0, 0)))            # (Hpad, Wpad, N)
    rows = jnp.stack([xp[dy:dy + H] for dy in range(KS)], axis=1)
    lhs1 = jnp.transpose(rows, (0, 3, 1, 2)).reshape(H * N, KS * Wpad)
    lhs1 = lhs1.astype(jnp.bfloat16)

    out = pl.pallas_call(
        net_kernel,
        out_shape=jax.ShapeDtypeStruct((N, NOUT_PAD), jnp.float32),
    )(lhs1, w1t, b1w, w2t, b2w, wl, bl)
    # TODO(synk): when running many 16-image groups, add a leading "parallel"
    # grid axis with per-group BlockSpecs (keeps v7x's 2nd TensorCore busy and
    # pipelines DMA on v5e/v6e); size those blocks for v7x's 32 MiB scoped VMEM.
    return out[:, :NOUT]


def reference_forward(x, params):
    """Pure-JAX f32 reference matching the PyTorch forward exactly."""
    conv1_w, conv1_b, conv2_w, conv2_b, lin_w, lin_b = params
    dn = ('NCHW', 'OIHW', 'NCHW')
    y = lax.conv_general_dilated(x, conv1_w, (1, 1), [(PAD, PAD), (PAD, PAD)],
                                 dimension_numbers=dn,
                                 precision=lax.Precision.HIGHEST)
    y = y + conv1_b[None, :, None, None]
    y = jnp.where(y > 0, y, SLOPE * y)
    y = lax.conv_general_dilated(y, conv2_w, (1, 1), [(PAD, PAD), (PAD, PAD)],
                                 dimension_numbers=dn,
                                 precision=lax.Precision.HIGHEST)
    y = y + conv2_b[None, :, None, None]
    y = jnp.where(y > 0, y, SLOPE * y)
    y = y.reshape(N, C2, Hp, 2, Wp, 2).max(axis=(3, 5))       # MaxPool2d(2, 2)
    y = y.reshape(N, -1)
    return jnp.dot(y, lin_w.T, precision=lax.Precision.HIGHEST) + lin_b


if __name__ == "__main__":
    key = jax.random.PRNGKey(0)
    kx, k1, k2, k3, k4, k5, k6 = jax.random.split(key, 7)

    x = jax.random.normal(kx, (N, C0, H, W), jnp.float32)
    params = (
        0.1 * jax.random.normal(k1, (C1, C0, KS, KS), jnp.float32),  # conv1.w
        0.1 * jax.random.normal(k2, (C1,), jnp.float32),             # conv1.b
        0.1 * jax.random.normal(k3, (C2, C1, KS, KS), jnp.float32),  # conv2.w
        0.1 * jax.random.normal(k4, (C2,), jnp.float32),             # conv2.b
        0.1 * jax.random.normal(k5, (NOUT, FEAT), jnp.float32),      # lin.w
        0.1 * jax.random.normal(k6, (NOUT,), jnp.float32),           # lin.b
    )

    packed = prepare_packed_params(params)   # one-time, off the per-call path
    out = jax.block_until_ready(net_forward(x, packed))
    ref = jax.block_until_ready(reference_forward(x, params))

    assert out.shape == (N, NOUT), out.shape
    # bf16 MXU operands (f32 accumulation) vs the f32 HIGHEST reference: the
    # rounding of inputs/weights across three matmul layers gives ~1e-2 max
    # abs deviation here; structural bugs produce O(0.1-1) errors.
    if not jnp.allclose(out, ref, rtol=5e-2, atol=5e-2):
        max_err = float(jnp.max(jnp.abs(out - ref)))
        raise AssertionError(f"kernel/reference mismatch, max abs err={max_err}")
    print("KERNEL_OK")
</pallas_src>

<mosaic_0001>
module attributes {stable_mosaic.version = 11 : i64} {
  func.func @net_kernel(%arg0: memref<128x60xbf16, #tpu.memory_space<vmem>>, %arg1: memref<60x64xbf16, #tpu.memory_space<vmem>>, %arg2: memref<1x64xf32, #tpu.memory_space<vmem>>, %arg3: memref<320x64xbf16, #tpu.memory_space<vmem>>, %arg4: memref<1x64xf32, #tpu.memory_space<vmem>>, %arg5: memref<4x56x128xbf16, #tpu.memory_space<vmem>>, %arg6: memref<1x128xf32, #tpu.memory_space<vmem>>, %arg7: memref<16x128xf32, #tpu.memory_space<vmem>>) attributes {dimension_semantics = [], scalar_prefetch = 0 : i64, scratch_operands = 0 : i64, tpu.core_type = #tpu.core_type<tc>} {
    %c0 = arith.constant 0 : index
    %c0_0 = arith.constant 0 : index
    %0 = vector.load %arg0[%c0, %c0_0] : memref<128x60xbf16, #tpu.memory_space<vmem>>, vector<128x60xbf16>
    %c0_1 = arith.constant 0 : index
    %c0_2 = arith.constant 0 : index
    %1 = vector.load %arg1[%c0_1, %c0_2] : memref<60x64xbf16, #tpu.memory_space<vmem>>, vector<60x64xbf16>
    %cst = arith.constant dense<0.000000e+00> : vector<128x64xf32>
    %2 = tpu.matmul %0, %1, %cst {dimension_numbers = #tpu.dot_dimension_numbers<[1], [0], [0], [1], [0, 0, 1, 1], [], []>} : vector<128x60xbf16>, vector<60x64xbf16>, vector<128x64xf32> -> vector<128x64xf32>
    %c0_3 = arith.constant 0 : index
    %c0_4 = arith.constant 0 : index
    %3 = vector.load %arg2[%c0_3, %c0_4] : memref<1x64xf32, #tpu.memory_space<vmem>>, vector<1x64xf32>
    %4 = vector.broadcast %3 : vector<1x64xf32> to vector<128x64xf32>
    %5 = arith.addf %2, %4 : vector<128x64xf32>
    %cst_5 = arith.constant 0.000000e+00 : f32
    %6 = vector.broadcast %cst_5 : f32 to vector<128x64xf32>
    %7 = arith.cmpf ogt, %5, %6 : vector<128x64xf32>
    %cst_6 = arith.constant 0.00999999977 : f32
    %8 = vector.broadcast %cst_6 : f32 to vector<128x64xf32>
    %9 = arith.mulf %8, %5 : vector<128x64xf32>
    %10 = arith.select %7, %5, %9 : vector<128x64xi1>, vector<128x64xf32>
    %11 = arith.truncf %10 : vector<128x64xf32> to vector<128x64xbf16>
    %cst_7 = arith.constant 0.000000e+00 : bf16
    %12 = vector.broadcast %cst_7 : bf16 to vector<32x64xbf16>
    %13 = tpu.concatenate %12, %11, %12 in 0 : vector<32x64xbf16>, vector<128x64xbf16>, vector<32x64xbf16> -> vector<192x64xbf16>
    %14 = vector.extract_strided_slice %13 {offsets = [0, 0], sizes = [128, 64], strides = [1, 1]} : vector<192x64xbf16> to vector<128x64xbf16>
    %15 = vector.extract_strided_slice %13 {offsets = [16, 0], sizes = [128, 64], strides = [1, 1]} : vector<192x64xbf16> to vector<128x64xbf16>
    %16 = vector.extract_strided_slice %13 {offsets = [32, 0], sizes = [128, 64], strides = [1, 1]} : vector<192x64xbf16> to vector<128x64xbf16>
    %17 = vector.extract_strided_slice %13 {offsets = [48, 0], sizes = [128, 64], strides = [1, 1]} : vector<192x64xbf16> to vector<128x64xbf16>
    %18 = vector.extract_strided_slice %13 {offsets = [64, 0], sizes = [128, 64], strides = [1, 1]} : vector<192x64xbf16> to vector<128x64xbf16>
    %19 = tpu.concatenate %14, %15, %16, %17, %18 in 1 : vector<128x64xbf16>, vector<128x64xbf16>, vector<128x64xbf16>, vector<128x64xbf16>, vector<128x64xbf16> -> vector<128x320xbf16>
    %c0_8 = arith.constant 0 : index
    %c0_9 = arith.constant 0 : index
    %20 = vector.load %arg3[%c0_8, %c0_9] : memref<320x64xbf16, #tpu.memory_space<vmem>>, vector<320x64xbf16>
    %cst_10 = arith.constant dense<0.000000e+00> : vector<128x64xf32>
    %21 = tpu.matmul %19, %20, %cst_10 {dimension_numbers = #tpu.dot_dimension_numbers<[1], [0], [0], [1], [0, 0, 1, 1], [], []>} : vector<128x320xbf16>, vector<320x64xbf16>, vector<128x64xf32> -> vector<128x64xf32>
    %c0_11 = arith.constant 0 : index
    %c0_12 = arith.constant 0 : index
    %22 = vector.load %arg4[%c0_11, %c0_12] : memref<1x64xf32, #tpu.memory_space<vmem>>, vector<1x64xf32>
    %23 = vector.broadcast %22 : vector<1x64xf32> to vector<128x64xf32>
    %24 = arith.addf %21, %23 : vector<128x64xf32>
    %cst_13 = arith.constant 0.000000e+00 : f32
    %25 = vector.broadcast %cst_13 : f32 to vector<128x64xf32>
    %26 = arith.cmpf ogt, %24, %25 : vector<128x64xf32>
    %cst_14 = arith.constant 0.00999999977 : f32
    %27 = vector.broadcast %cst_14 : f32 to vector<128x64xf32>
    %28 = arith.mulf %27, %24 : vector<128x64xf32>
    %29 = arith.select %26, %24, %28 : vector<128x64xi1>, vector<128x64xf32>
    %30 = vector.shape_cast %29 : vector<128x64xf32> to vector<4x32x64xf32>
    %31 = vector.extract_strided_slice %30 {offsets = [0, 0, 0], sizes = [4, 16, 64], strides = [1, 1, 1]} : vector<4x32x64xf32> to vector<4x16x64xf32>
    %32 = vector.extract_strided_slice %30 {offsets = [0, 16, 0], sizes = [4, 16, 64], strides = [1, 1, 1]} : vector<4x32x64xf32> to vector<4x16x64xf32>
    %33 = arith.maximumf %31, %32 : vector<4x16x64xf32>
    %34 = vector.extract_strided_slice %33 {offsets = [0, 0, 0], sizes = [4, 16, 56], strides = [1, 1, 1]} : vector<4x16x64xf32> to vector<4x16x56xf32>
    %35 = vector.extract_strided_slice %33 {offsets = [0, 0, 8], sizes = [4, 16, 56], strides = [1, 1, 1]} : vector<4x16x64xf32> to vector<4x16x56xf32>
    %36 = arith.maximumf %34, %35 : vector<4x16x56xf32>
    %37 = arith.truncf %36 : vector<4x16x56xf32> to vector<4x16x56xbf16>
    %cst_15 = arith.constant 0.000000e+00 : f32
    %38 = vector.broadcast %cst_15 : f32 to vector<16x128xf32>
    %c0_16 = arith.constant 0 : index
    %c0_17 = arith.constant 0 : index
    %39 = vector.load %arg6[%c0_16, %c0_17] : memref<1x128xf32, #tpu.memory_space<vmem>>, vector<1x128xf32>
    %40 = vector.broadcast %39 : vector<1x128xf32> to vector<16x128xf32>
    %41 = arith.addf %38, %40 : vector<16x128xf32>
    %42 = vector.extract_strided_slice %37 {offsets = [0, 0, 0], sizes = [1, 16, 56], strides = [1, 1, 1]} : vector<4x16x56xbf16> to vector<1x16x56xbf16>
    %43 = vector.shape_cast %42 : vector<1x16x56xbf16> to vector<16x56xbf16>
    %c0_18 = arith.constant 0 : index
    %c0_19 = arith.constant 0 : index
    %c0_20 = arith.constant 0 : index
    %44 = vector.load %arg5[%c0_18, %c0_19, %c0_20] : memref<4x56x128xbf16, #tpu.memory_space<vmem>>, vector<1x56x128xbf16>
    %45 = vector.shape_cast %44 : vector<1x56x128xbf16> to vector<56x128xbf16>
    %cst_21 = arith.constant dense<0.000000e+00> : vector<16x128xf32>
    %46 = tpu.matmul %43, %45, %cst_21 {dimension_numbers = #tpu.dot_dimension_numbers<[1], [0], [0], [1], [0, 0, 1, 1], [], []>} : vector<16x56xbf16>, vector<56x128xbf16>, vector<16x128xf32> -> vector<16x128xf32>
    %47 = arith.addf %41, %46 : vector<16x128xf32>
    %48 = vector.extract_strided_slice %37 {offsets = [1, 0, 0], sizes = [1, 16, 56], strides = [1, 1, 1]} : vector<4x16x56xbf16> to vector<1x16x56xbf16>
    %49 = vector.shape_cast %48 : vector<1x16x56xbf16> to vector<16x56xbf16>
    %c1 = arith.constant 1 : index
    %c0_22 = arith.constant 0 : index
    %c0_23 = arith.constant 0 : index
    %50 = vector.load %arg5[%c1, %c0_22, %c0_23] : memref<4x56x128xbf16, #tpu.memory_space<vmem>>, vector<1x56x128xbf16>
    %51 = vector.shape_cast %50 : vector<1x56x128xbf16> to vector<56x128xbf16>
    %cst_24 = arith.constant dense<0.000000e+00> : vector<16x128xf32>
    %52 = tpu.matmul %49, %51, %cst_24 {dimension_numbers = #tpu.dot_dimension_numbers<[1], [0], [0], [1], [0, 0, 1, 1], [], []>} : vector<16x56xbf16>, vector<56x128xbf16>, vector<16x128xf32> -> vector<16x128xf32>
    %53 = arith.addf %47, %52 : vector<16x128xf32>
    %54 = vector.extract_strided_slice %37 {offsets = [2, 0, 0], sizes = [1, 16, 56], strides = [1, 1, 1]} : vector<4x16x56xbf16> to vector<1x16x56xbf16>
    %55 = vector.shape_cast %54 : vector<1x16x56xbf16> to vector<16x56xbf16>
    %c2 = arith.constant 2 : index
    %c0_25 = arith.constant 0 : index
    %c0_26 = arith.constant 0 : index
    %56 = vector.load %arg5[%c2, %c0_25, %c0_26] : memref<4x56x128xbf16, #tpu.memory_space<vmem>>, vector<1x56x128xbf16>
    %57 = vector.shape_cast %56 : vector<1x56x128xbf16> to vector<56x128xbf16>
    %cst_27 = arith.constant dense<0.000000e+00> : vector<16x128xf32>
    %58 = tpu.matmul %55, %57, %cst_27 {dimension_numbers = #tpu.dot_dimension_numbers<[1], [0], [0], [1], [0, 0, 1, 1], [], []>} : vector<16x56xbf16>, vector<56x128xbf16>, vector<16x128xf32> -> vector<16x128xf32>
    %59 = arith.addf %53, %58 : vector<16x128xf32>
    %60 = vector.extract_strided_slice %37 {offsets = [3, 0, 0], sizes = [1, 16, 56], strides = [1, 1, 1]} : vector<4x16x56xbf16> to vector<1x16x56xbf16>
    %61 = vector.shape_cast %60 : vector<1x16x56xbf16> to vector<16x56xbf16>
    %c3 = arith.constant 3 : index
    %c0_28 = arith.constant 0 : index
    %c0_29 = arith.constant 0 : index
    %62 = vector.load %arg5[%c3, %c0_28, %c0_29] : memref<4x56x128xbf16, #tpu.memory_space<vmem>>, vector<1x56x128xbf16>
    %63 = vector.shape_cast %62 : vector<1x56x128xbf16> to vector<56x128xbf16>
    %cst_30 = arith.constant dense<0.000000e+00> : vector<16x128xf32>
    %64 = tpu.matmul %61, %63, %cst_30 {dimension_numbers = #tpu.dot_dimension_numbers<[1], [0], [0], [1], [0, 0, 1, 1], [], []>} : vector<16x56xbf16>, vector<56x128xbf16>, vector<16x128xf32> -> vector<16x128xf32>
    %65 = arith.addf %59, %64 : vector<16x128xf32>
    %c0_31 = arith.constant 0 : index
    %c0_32 = arith.constant 0 : index
    %66 = vector.load %arg7[%c0_31, %c0_32] : memref<16x128xf32, #tpu.memory_space<vmem>>, vector<16x128xf32>
    tpu.vector_store %arg7[%c0_31, %c0_32], %65 {strides = array<i32>} : memref<16x128xf32, #tpu.memory_space<vmem>>, vector<16x128xf32>,
    return
  }
}

</mosaic_0001>

<llo_original>
// kernel: net_forward.1
$region0: #{net_forward.1}
  #allocation0 [shape = 'u32[]', space=smem, size = 0x4, offset = 0x4, fixed_abs, tag = 'smem constant byte address 0x4 - core index']
  #allocation1 [shape = 'u32[144,128]{1,0:T(1,128)}', space=vmem, size = 0x12000, scoped, tag = 'internal scratch']
  %s0 = inlined_call_operand.vmem [shape: bf16[128,60], index: 0, kind: input, shape index: {}]
  %s1 = inlined_call_operand.vmem [shape: bf16[60,64], index: 1, kind: input, shape index: {}]
  %s2 = inlined_call_operand.vmem [shape: f32[1,64], index: 2, kind: input, shape index: {}]
  %s3 = inlined_call_operand.vmem [shape: bf16[320,64], index: 3, kind: input, shape index: {}]
  %s4 = inlined_call_operand.vmem [shape: f32[1,64], index: 4, kind: input, shape index: {}]
  %s5 = inlined_call_operand.vmem [shape: bf16[4,56,128], index: 5, kind: input, shape index: {}]
  %s6 = inlined_call_operand.vmem [shape: f32[1,128], index: 6, kind: input, shape index: {}]
  %s7 = inlined_call_operand.hbm [shape: f32[16,128], index: 7, kind: output, shape index: {}]
  %s8 = sld [smem:[#allocation0]]
  $region38: #{net_forward.1} parent=0
    _
  %s10 = ssub.s32 1, %s8
  %s11 = scalar_select 0, %s10, %s8
  $region1: #{net_forward.1} parent=0
    #allocation2 [shape = 'u8[8192]{0}', space=vmem, size = 0x2000, scoped, tag = 'output window, operand 0, single buffered']
    #allocation3 [shape = 's32[1]{0}', space=sflag, size = 0x4, scoped, tag = 'scoped memory for net_forward.1']
    %12 = vsyncpa [#allocation3], 0
    // Predicated region
    $region2: #{net_forward.1} parent=1 // pred_check
      _
    $region3: #{net_forward.1} parent=1 // pred_check_branch
      %14 = sbr.rel (0) target = $region5
    $region4: #{net_forward.1} parent=1 // pred_region
      _
    $region5: #{net_forward.1} parent=1 // pred_fallthru
      _
    // Predicated region
    $region6: #{net_forward.1} parent=1 // pred_check
      _
    $region7: #{net_forward.1} parent=1 // pred_check_branch
      %16 = sbr.rel (0) target = $region9
    $region8: #{net_forward.1} parent=1 // pred_region
      _
    $region9: #{net_forward.1} parent=1 // pred_fallthru
      _
    // Predicated region
    $region10: #{net_forward.1} parent=1 // pred_check
      _
    $region11: #{net_forward.1} parent=1 // pred_check_branch
      %18 = sbr.rel (0) target = $region13
    $region12: #{net_forward.1} parent=1 // pred_region
      _
    $region13: #{net_forward.1} parent=1 // pred_fallthru
      _
    // Predicated region
    $region14: #{net_forward.1} parent=1 // pred_check
      _
    $region15: #{net_forward.1} parent=1 // pred_check_branch
      %20 = sbr.rel (0) target = $region17
    $region16: #{net_forward.1} parent=1 // pred_region
      _
    $region17: #{net_forward.1} parent=1 // pred_fallthru
      _
    // Predicated region
    $region18: #{net_forward.1} parent=1 // pred_check
      _
    $region19: #{net_forward.1} parent=1 // pred_check_branch
      %22 = sbr.rel (0) target = $region21
    $region20: #{net_forward.1} parent=1 // pred_region
      _
    $region21: #{net_forward.1} parent=1 // pred_fallthru
      _
    // Predicated region
    $region22: #{net_forward.1} parent=1 // pred_check
      _
    $region23: #{net_forward.1} parent=1 // pred_check_branch
      %24 = sbr.rel (0) target = $region25
    $region24: #{net_forward.1} parent=1 // pred_region
      _
    $region25: #{net_forward.1} parent=1 // pred_fallthru
      _
    // Predicated region
    $region26: #{net_forward.1} parent=1 // pred_check
      _
    $region27: #{net_forward.1} parent=1 // pred_check_branch
      %26 = sbr.rel (0) target = $region29
    $region28: #{net_forward.1} parent=1 // pred_region
      _
    $region29: #{net_forward.1} parent=1 // pred_fallthru
      _
    %v28 = vld [vmem:[%s0] sm:$0xf]
    %v29 = vld [vmem:[%s0 + $0x4] sm:$0xf]
    %v30 = vld [vmem:[%s0 + $0x8] sm:$0xf]
    %v31 = vld [vmem:[%s0 + $0xc] sm:$0xf]
    %v32 = vld [vmem:[%s0 + $0x10] sm:$0xf]
    %v33 = vld [vmem:[%s0 + $0x14] sm:$0xf]
    %v34 = vld [vmem:[%s0 + $0x18] sm:$0xf]
    %v35 = vld [vmem:[%s0 + $0x1c] sm:$0xf]
    %v36 = vld [vmem:[%s0 + $0x20] sm:$0xf]
    %v37 = vld [vmem:[%s0 + $0x24] sm:$0xf]
    %v38 = vld [vmem:[%s0 + $0x28] sm:$0xf]
    %v39 = vld [vmem:[%s0 + $0x2c] sm:$0xf]
    %v40 = vld [vmem:[%s0 + $0x30] sm:$0xf]
    %v41 = vld [vmem:[%s0 + $0x34] sm:$0xf]
    %v42 = vld [vmem:[%s0 + $0x38] sm:$0xf]
    %v43 = vld [vmem:[%s0 + $0x3c] sm:$0xf]
    %v44 = vld [vmem:[%s1] sm:$0xf]
    %v45 = vld [vmem:[%s1 + $0x4] sm:$0xf]
    %v46 = vld [vmem:[%s1 + $0x8] sm:$0xf]
    %v47 = vld [vmem:[%s1 + $0xc] sm:$0xf]
    %v48 = vld [vmem:[%s1 + $0x10] sm:$0xf]
    %v49 = vld [vmem:[%s1 + $0x14] sm:$0xf]
    %v50 = vld [vmem:[%s1 + $0x18] sm:$0xf]
    %v51 = vld [vmem:[%s1 + $0x1c] sm:$0x3]
    %v52 = vld [vmem:[%s2] sm:$0x1]
    %v54 = vlaneseq
    %v55 = vshrl.u32 %v54, 7
    %v56 = vsub.s32 0, %v55
    %v57 = vrot.slane %v52, %v56
    %v75 = vunpack.c.l.b16 %v28
    %v76 = vunpack.c.l.b16 %v29
    %v77 = vunpack.c.l.b16 %v30
    %v78 = vunpack.c.l.b16 %v31
    %v79 = vunpack.c.l.b16 %v32
    %v80 = vunpack.c.l.b16 %v33
    %v81 = vunpack.c.l.b16 %v34
    %v82 = vunpack.c.l.b16 %v35
    %v83 = vunpack.c.l.b16 %v36
    %v84 = vunpack.c.l.b16 %v37
    %v85 = vunpack.c.l.b16 %v38
    %v86 = vunpack.c.l.b16 %v39
    %v87 = vunpack.c.l.b16 %v40
    %v88 = vunpack.c.l.b16 %v41
    %v89 = vunpack.c.l.b16 %v42
    %v90 = vunpack.c.l.b16 %v43
    %v91 = vpack.c.b16 %v76, %v75
    %v92 = vpack.c.b16 %v78, %v77
    %v93 = vpack.c.b16 %v80, %v79
    %v94 = vpack.c.b16 %v82, %v81
    %v95 = vpack.c.b16 %v84, %v83
    %v96 = vpack.c.b16 %v86, %v85
    %v97 = vpack.c.b16 %v88, %v87
    %v98 = vpack.c.b16 %v90, %v89
    %v107 = vunpack.c.l.b16 %v44
    %v108 = vunpack.c.l.b16 %v45
    %v109 = vunpack.c.l.b16 %v46
    %v110 = vunpack.c.l.b16 %v47
    %v111 = vunpack.c.l.b16 %v48
    %v112 = vunpack.c.l.b16 %v49
    %v113 = vunpack.c.l.b16 %v50
    %v114 = vunpack.c.l.b16 %v51
    %v115 = vpack.c.b16 %v108, %v107
    %v116 = vpack.c.b16 %v110, %v109
    %v117 = vpack.c.b16 %v112, %v111
    %v118 = vpack.c.b16 %v114, %v113
    %vm122 = vcmask 490496
    %v124 = vsel %vm122, %v91, 0
    %v127 = vsel %vm122, %v92, 0
    %v130 = vsel %vm122, %v93, 0
    %v133 = vsel %vm122, %v94, 0
    %v136 = vsel %vm122, %v95, 0
    %v139 = vsel %vm122, %v96, 0
    %v142 = vsel %vm122, %v97, 0
    %v145 = vsel %vm122, %v98, 0
    %vm147 = vcmask 1045504
    %v149 = vsel %vm147, %v118, 0
    %151 = vmatprep.subr.bf16.mxu0 0
    %152 = vmatpush1.bf16.msra.mxu0 0
    %153 = vmatprep.subr.bf16.mxu0 0
    %154 = vmatpush1.bf16.msra.mxu0 0
    %155 = vmatprep.subr.bf16.mxu0 0
    %156 = vmatpush1.bf16.msra.mxu0 0
    %157 = vmatprep.subr.bf16.mxu0 0
    %158 = vmatpush1.bf16.msra.mxu0 0
    %159 = vmatprep.subr.bf16.mxu0 0
    %160 = vmatpush1.bf16.msra.mxu0 %v149
    %161 = vmatprep.subr.bf16.mxu0 0
    %162 = vmatpush1.bf16.msra.mxu0 %v117
    %163 = vmatprep.subr.bf16.mxu0 0
    %164 = vmatpush1.bf16.msra.mxu0 %v116
    %165 = vmatprep.subr.bf16.mxu0 0
    %166 = vmatpush1.bf16.msra.mxu0 %v115
    %167 = vmatprep.subr.bf16.mxu0 0
    %168 = vmatpush2.bf16.msra.mxu0 0
    %169 = vmatprep.subr.bf16.mxu0 0
    %170 = vmatpush2.bf16.msra.mxu0 0
    %171 = vmatprep.subr.bf16.mxu0 0
    %172 = vmatpush2.bf16.msra.mxu0 0
    %173 = vmatprep.subr.bf16.mxu0 0
    %174 = vmatpush2.bf16.msra.mxu0 0
    %175 = vmatprep.subr.bf16.mxu0 0
    %176 = vmatpush2.bf16.msra.mxu0 0
    %177 = vmatprep.subr.bf16.mxu0 0
    %178 = vmatpush2.bf16.msra.mxu0 0
    %179 = vmatprep.subr.bf16.mxu0 0
    %180 = vmatpush2.bf16.msra.mxu0 0
    %181 = vmatprep.subr.bf16.mxu0 0
    %182 = vmatpush2.bf16.msra.mxu0 0
    %183 = vmatprep.mubr.bf16.mxu0 0
    %184 = vmatmul.mubr.bf16.gmra.mxu0 %v124
    %v185 = vpop.f32.mrf.mxu0
    %v186 = vadd.f32 %v57, %v185
    %v187 = vpop.f32.mrf.mxu0
    %v188 = vpop.f32.mrf.mxu0
    %v189 = vadd.f32 %v57, %v188
    %v190 = vpop.f32.mrf.mxu0
    %191 = vmatprep.mubr.bf16.mxu0 0
    %192 = vmatmul.mubr.bf16.gmra.mxu0 %v127
    %v193 = vpop.f32.mrf.mxu0
    %v194 = vadd.f32 %v57, %v193
    %v195 = vpop.f32.mrf.mxu0
    %v196 = vpop.f32.mrf.mxu0
    %v197 = vadd.f32 %v57, %v196
    %v198 = vpop.f32.mrf.mxu0
    %199 = vmatprep.mubr.bf16.mxu0 0
    %200 = vmatmul.mubr.bf16.gmra.mxu0 %v130
    %v201 = vpop.f32.mrf.mxu0
    %v202 = vadd.f32 %v57, %v201
    %v203 = vpop.f32.mrf.mxu0
    %v204 = vpop.f32.mrf.mxu0
    %v205 = vadd.f32 %v57, %v204
    %v206 = vpop.f32.mrf.mxu0
    %207 = vmatprep.mubr.bf16.mxu0 0
    %208 = vmatmul.mubr.bf16.gmra.mxu0 %v133
    %v209 = vpop.f32.mrf.mxu0
    %v210 = vadd.f32 %v57, %v209
    %v211 = vpop.f32.mrf.mxu0
    %v212 = vpop.f32.mrf.mxu0
    %v213 = vadd.f32 %v57, %v212
    %v214 = vpop.f32.mrf.mxu0
    %215 = vmatprep.mubr.bf16.mxu0 0
    %216 = vmatmul.mubr.bf16.gmra.mxu0 %v136
    %v217 = vpop.f32.mrf.mxu0
    %v218 = vadd.f32 %v57, %v217
    %v219 = vpop.f32.mrf.mxu0
    %v220 = vpop.f32.mrf.mxu0
    %v221 = vadd.f32 %v57, %v220
    %v222 = vpop.f32.mrf.mxu0
    %223 = vmatprep.mubr.bf16.mxu0 0
    %224 = vmatmul.mubr.bf16.gmra.mxu0 %v139
    %v225 = vpop.f32.mrf.mxu0
    %v226 = vadd.f32 %v57, %v225
    %v227 = vpop.f32.mrf.mxu0
    %v228 = vpop.f32.mrf.mxu0
    %v229 = vadd.f32 %v57, %v228
    %v230 = vpop.f32.mrf.mxu0
    %231 = vmatprep.mubr.bf16.mxu0 0
    %232 = vmatmul.mubr.bf16.gmra.mxu0 %v142
    %v233 = vpop.f32.mrf.mxu0
    %v234 = vadd.f32 %v57, %v233
    %v235 = vpop.f32.mrf.mxu0
    %v236 = vpop.f32.mrf.mxu0
    %v237 = vadd.f32 %v57, %v236
    %v238 = vpop.f32.mrf.mxu0
    %239 = vmatprep.mubr.bf16.mxu0 0
    %240 = vmatmul.mubr.bf16.gmra.mxu0 %v145
    %v241 = vpop.f32.mrf.mxu0
    %v242 = vadd.f32 %v57, %v241
    %v243 = vpop.f32.mrf.mxu0
    %v244 = vpop.f32.mrf.mxu0
    %v245 = vadd.f32 %v57, %v244
    %v246 = vpop.f32.mrf.mxu0
    %247 = vdwg.mxu0
    %vm248 = vcmp.gt.f32.partialorder %v186, 0.0
    %vm249 = vcmp.gt.f32.partialorder %v189, 0.0
    %vm250 = vcmp.gt.f32.partialorder %v194, 0.0
    %vm251 = vcmp.gt.f32.partialorder %v197, 0.0
    %vm252 = vcmp.gt.f32.partialorder %v202, 0.0
    %vm253 = vcmp.gt.f32.partialorder %v205, 0.0
    %vm254 = vcmp.gt.f32.partialorder %v210, 0.0
    %vm255 = vcmp.gt.f32.partialorder %v213, 0.0
    %vm256 = vcmp.gt.f32.partialorder %v218, 0.0
    %vm257 = vcmp.gt.f32.partialorder %v221, 0.0
    %vm258 = vcmp.gt.f32.partialorder %v226, 0.0
    %vm259 = vcmp.gt.f32.partialorder %v229, 0.0
    %vm260 = vcmp.gt.f32.partialorder %v234, 0.0
    %vm261 = vcmp.gt.f32.partialorder %v237, 0.0
    %vm262 = vcmp.gt.f32.partialorder %v242, 0.0
    %vm263 = vcmp.gt.f32.partialorder %v245, 0.0
    %v264 = vmul.f32 %v186, 0.01
    %v265 = vmul.f32 %v189, 0.01
    %v266 = vmul.f32 %v194, 0.01
    %v267 = vmul.f32 %v197, 0.01
    %v268 = vmul.f32 %v202, 0.01
    %v269 = vmul.f32 %v205, 0.01
    %v270 = vmul.f32 %v210, 0.01
    %v271 = vmul.f32 %v213, 0.01
    %v272 = vmul.f32 %v218, 0.01
    %v273 = vmul.f32 %v221, 0.01
    %v274 = vmul.f32 %v226, 0.01
    %v275 = vmul.f32 %v229, 0.01
    %v276 = vmul.f32 %v234, 0.01
    %v277 = vmul.f32 %v237, 0.01
    %v278 = vmul.f32 %v242, 0.01
    %v279 = vmul.f32 %v245, 0.01
    %v280 = vsel %vm248, %v186, %v264
    %v281 = vsel %vm249, %v189, %v265
    %v282 = vsel %vm250, %v194, %v266
    %v283 = vsel %vm251, %v197, %v267
    %v284 = vsel %vm252, %v202, %v268
    %v285 = vsel %vm253, %v205, %v269
    %v286 = vsel %vm254, %v210, %v270
    %v287 = vsel %vm255, %v213, %v271
    %v288 = vsel %vm256, %v218, %v272
    %v289 = vsel %vm257, %v221, %v273
    %v290 = vsel %vm258, %v226, %v274
    %v291 = vsel %vm259, %v229, %v275
    %v292 = vsel %vm260, %v234, %v276
    %v293 = vsel %vm261, %v237, %v277
    %v294 = vsel %vm262, %v242, %v278
    %v295 = vsel %vm263, %v245, %v279
    %v296 = vpack.c.bf16 %v281, %v280
    %v297 = vpack.c.bf16 %v283, %v282
    %v298 = vpack.c.bf16 %v285, %v284
    %v299 = vpack.c.bf16 %v287, %v286
    %v300 = vpack.c.bf16 %v289, %v288
    %v301 = vpack.c.bf16 %v291, %v290
    %v302 = vpack.c.bf16 %v293, %v292
    %v303 = vpack.c.bf16 %v295, %v294
    %312 = vrot.lane.b32.xlu0 0, 64
    %v313 = vpop.permute.xlu0 %312
    %314 = vrot.lane.b32.xlu0 %v296, 64
    %v315 = vpop.permute.xlu0 %314
    %316 = vrot.lane.b32.xlu0 %v297, 64
    %v317 = vpop.permute.xlu0 %316
    %318 = vrot.lane.b32.xlu0 %v298, 64
    %v319 = vpop.permute.xlu0 %318
    %320 = vrot.lane.b32.xlu0 %v299, 64
    %v321 = vpop.permute.xlu0 %320
    %322 = vrot.lane.b32.xlu0 %v300, 64
    %v323 = vpop.permute.xlu0 %322
    %324 = vrot.lane.b32.xlu0 %v301, 64
    %v325 = vpop.permute.xlu0 %324
    %326 = vrot.lane.b32.xlu0 %v302, 64
    %v327 = vpop.permute.xlu0 %326
    %329 = vrot.lane.b32.xlu0 %v303, 64
    %v330 = vpop.permute.xlu0 %329
    %vm331 = vcmask 523264
    %v334 = vsel %vm331, 0, %v313
    %v337 = vsel %vm331, 0, %v315
    %v341 = vsel %vm331, %v296, %v317
    %v345 = vsel %vm331, %v297, %v319
    %v349 = vsel %vm331, %v298, %v321
    %v353 = vsel %vm331, %v299, %v323
    %v357 = vsel %vm331, %v300, %v325
    %v361 = vsel %vm331, %v301, %v327
    %v365 = vsel %vm331, %v302, %v330
    %v368 = vsel %vm331, %v303, %v313
    %v370 = vld [vmem:[%s3] sm:$0xf]
    %v371 = vld [vmem:[%s3 + $0x4] sm:$0xf]
    %v372 = vld [vmem:[%s3 + $0x8] sm:$0xf]
    %v373 = vld [vmem:[%s3 + $0xc] sm:$0xf]
    %v374 = vld [vmem:[%s3 + $0x10] sm:$0xf]
    %v375 = vld [vmem:[%s3 + $0x14] sm:$0xf]
    %v376 = vld [vmem:[%s3 + $0x18] sm:$0xf]
    %v377 = vld [vmem:[%s3 + $0x1c] sm:$0xf]
    %v378 = vld [vmem:[%s3 + $0x20] sm:$0xf]
    %v379 = vld [vmem:[%s3 + $0x24] sm:$0xf]
    %v380 = vld [vmem:[%s3 + $0x28] sm:$0xf]
    %v381 = vld [vmem:[%s3 + $0x2c] sm:$0xf]
    %v382 = vld [vmem:[%s3 + $0x30] sm:$0xf]
    %v383 = vld [vmem:[%s3 + $0x34] sm:$0xf]
    %v384 = vld [vmem:[%s3 + $0x38] sm:$0xf]
    %v385 = vld [vmem:[%s3 + $0x3c] sm:$0xf]
    %v386 = vld [vmem:[%s3 + $0x40] sm:$0xf]
    %v387 = vld [vmem:[%s3 + $0x44] sm:$0xf]
    %v388 = vld [vmem:[%s3 + $0x48] sm:$0xf]
    %v389 = vld [vmem:[%s3 + $0x4c] sm:$0xf]
    %v390 = vld [vmem:[%s3 + $0x50] sm:$0xf]
    %v391 = vld [vmem:[%s3 + $0x54] sm:$0xf]
    %v392 = vld [vmem:[%s3 + $0x58] sm:$0xf]
    %v393 = vld [vmem:[%s3 + $0x5c] sm:$0xf]
    %v394 = vld [vmem:[%s3 + $0x60] sm:$0xf]
    %v395 = vld [vmem:[%s3 + $0x64] sm:$0xf]
    %v396 = vld [vmem:[%s3 + $0x68] sm:$0xf]
    %v397 = vld [vmem:[%s3 + $0x6c] sm:$0xf]
    %v398 = vld [vmem:[%s3 + $0x70] sm:$0xf]
    %v399 = vld [vmem:[%s3 + $0x74] sm:$0xf]
    %v400 = vld [vmem:[%s3 + $0x78] sm:$0xf]
    %v401 = vld [vmem:[%s3 + $0x7c] sm:$0xf]
    %v402 = vld [vmem:[%s3 + $0x80] sm:$0xf]
    %v403 = vld [vmem:[%s3 + $0x84] sm:$0xf]
    %v404 = vld [vmem:[%s3 + $0x88] sm:$0xf]
    %v405 = vld [vmem:[%s3 + $0x8c] sm:$0xf]
    %v406 = vld [vmem:[%s3 + $0x90] sm:$0xf]
    %v407 = vld [vmem:[%s3 + $0x94] sm:$0xf]
    %v408 = vld [vmem:[%s3 + $0x98] sm:$0xf]
    %v409 = vld [vmem:[%s3 + $0x9c] sm:$0xf]
    %v410 = vld [vmem:[%s4] sm:$0x1]
    %v412 = vlaneseq
    %v413 = vshrl.u32 %v412, 7
    %v414 = vsub.s32 0, %v413
    %v415 = vrot.slane %v410, %v414
    %v457 = vunpack.c.l.b16 %v370
    %v458 = vunpack.c.l.b16 %v371
    %v459 = vunpack.c.l.b16 %v372
    %v460 = vunpack.c.l.b16 %v373
    %v461 = vunpack.c.l.b16 %v374
    %v462 = vunpack.c.l.b16 %v375
    %v463 = vunpack.c.l.b16 %v376
    %v464 = vunpack.c.l.b16 %v377
    %v465 = vunpack.c.l.b16 %v378
    %v466 = vunpack.c.l.b16 %v379
    %v467 = vunpack.c.l.b16 %v380
    %v468 = vunpack.c.l.b16 %v381
    %v469 = vunpack.c.l.b16 %v382
    %v470 = vunpack.c.l.b16 %v383
    %v471 = vunpack.c.l.b16 %v384
    %v472 = vunpack.c.l.b16 %v385
    %v473 = vunpack.c.l.b16 %v386
    %v474 = vunpack.c.l.b16 %v387
    %v475 = vunpack.c.l.b16 %v388
    %v476 = vunpack.c.l.b16 %v389
    %v477 = vunpack.c.l.b16 %v390
    %v478 = vunpack.c.l.b16 %v391
    %v479 = vunpack.c.l.b16 %v392
    %v480 = vunpack.c.l.b16 %v393
    %v481 = vunpack.c.l.b16 %v394
    %v482 = vunpack.c.l.b16 %v395
    %v483 = vunpack.c.l.b16 %v396
    %v484 = vunpack.c.l.b16 %v397
    %v485 = vunpack.c.l.b16 %v398
    %v486 = vunpack.c.l.b16 %v399
    %v487 = vunpack.c.l.b16 %v400
    %v488 = vunpack.c.l.b16 %v401
    %v489 = vunpack.c.l.b16 %v402
    %v490 = vunpack.c.l.b16 %v403
    %v491 = vunpack.c.l.b16 %v404
    %v492 = vunpack.c.l.b16 %v405
    %v493 = vunpack.c.l.b16 %v406
    %v494 = vunpack.c.l.b16 %v407
    %v495 = vunpack.c.l.b16 %v408
    %v496 = vunpack.c.l.b16 %v409
    %v497 = vpack.c.b16 %v458, %v457
    %v498 = vpack.c.b16 %v460, %v459
    %v499 = vpack.c.b16 %v462, %v461
    %v500 = vpack.c.b16 %v464, %v463
    %v501 = vpack.c.b16 %v466, %v465
    %v502 = vpack.c.b16 %v468, %v467
    %v503 = vpack.c.b16 %v470, %v469
    %v504 = vpack.c.b16 %v472, %v471
    %v505 = vpack.c.b16 %v474, %v473
    %v506 = vpack.c.b16 %v476, %v475
    %v507 = vpack.c.b16 %v478, %v477
    %v508 = vpack.c.b16 %v480, %v479
    %v509 = vpack.c.b16 %v482, %v481
    %v510 = vpack.c.b16 %v484, %v483
    %v511 = vpack.c.b16 %v486, %v485
    %v512 = vpack.c.b16 %v488, %v487
    %v513 = vpack.c.b16 %v490, %v489
    %v514 = vpack.c.b16 %v492, %v491
    %v515 = vpack.c.b16 %v494, %v493
    %v516 = vpack.c.b16 %v496, %v495
    %v537 = vsel %vm331, %v298, 0
    %v539 = vsel %vm331, %v299, 0
    %v541 = vsel %vm331, %v300, 0
    %v543 = vsel %vm331, %v301, 0
    %v545 = vsel %vm331, %v302, 0
    %v547 = vsel %vm331, %v303, 0
    %v549 = vsel %vm331, 0, 0
    %551 = vmatprep.subr.bf16.mxu0 0
    %552 = vmatpush1.bf16.msra.mxu0 %v504
    %553 = vmatprep.subr.bf16.mxu0 0
    %554 = vmatpush1.bf16.msra.mxu0 %v503
    %555 = vmatprep.subr.bf16.mxu0 0
    %556 = vmatpush1.bf16.msra.mxu0 %v502
    %557 = vmatprep.subr.bf16.mxu0 0
    %558 = vmatpush1.bf16.msra.mxu0 %v501
    %559 = vmatprep.subr.bf16.mxu0 0
    %560 = vmatpush1.bf16.msra.mxu0 %v500
    %561 = vmatprep.subr.bf16.mxu0 0
    %562 = vmatpush1.bf16.msra.mxu0 %v499
    %563 = vmatprep.subr.bf16.mxu0 0
    %564 = vmatpush1.bf16.msra.mxu0 %v498
    %565 = vmatprep.subr.bf16.mxu0 0
    %566 = vmatpush1.bf16.msra.mxu0 %v497
    %567 = vmatprep.subr.bf16.mxu0 0
    %568 = vmatpush2.bf16.msra.mxu0 %v512
    %569 = vmatprep.subr.bf16.mxu0 0
    %570 = vmatpush2.bf16.msra.mxu0 %v511
    %571 = vmatprep.subr.bf16.mxu0 0
    %572 = vmatpush2.bf16.msra.mxu0 %v510
    %573 = vmatprep.subr.bf16.mxu0 0
    %574 = vmatpush2.bf16.msra.mxu0 %v509
    %575 = vmatprep.subr.bf16.mxu0 0
    %576 = vmatpush2.bf16.msra.mxu0 %v508
    %577 = vmatprep.subr.bf16.mxu0 0
    %578 = vmatpush2.bf16.msra.mxu0 %v507
    %579 = vmatprep.subr.bf16.mxu0 0
    %580 = vmatpush2.bf16.msra.mxu0 %v506
    %581 = vmatprep.subr.bf16.mxu0 0
    %582 = vmatpush2.bf16.msra.mxu0 %v505
    %583 = vmatprep.mubr.bf16.mxu0 %v341
    %584 = vmatmul.mubr.bf16.gmra.mxu0 %v334
    %v585 = vpop.f32.mrf.mxu0
    %v586 = vadd.f32 %v415, %v585
    %v587 = vpop.f32.mrf.mxu0
    %v588 = vpop.f32.mrf.mxu0
    %v589 = vadd.f32 %v415, %v588
    %v590 = vpop.f32.mrf.mxu0
    %591 = vmatprep.mubr.bf16.mxu0 %v345
    %592 = vmatmul.mubr.bf16.gmra.mxu0 %v337
    %v593 = vpop.f32.mrf.mxu0
    %v594 = vadd.f32 %v415, %v593
    %v595 = vpop.f32.mrf.mxu0
    %v596 = vpop.f32.mrf.mxu0
    %v597 = vadd.f32 %v415, %v596
    %v598 = vpop.f32.mrf.mxu0
    %599 = vmatprep.mubr.bf16.mxu0 %v349
    %600 = vmatmul.mubr.bf16.gmra.mxu0 %v341
    %v601 = vpop.f32.mrf.mxu0
    %v602 = vadd.f32 %v415, %v601
    %v603 = vpop.f32.mrf.mxu0
    %v604 = vpop.f32.mrf.mxu0
    %v605 = vadd.f32 %v415, %v604
    %v606 = vpop.f32.mrf.mxu0
    %607 = vmatprep.mubr.bf16.mxu0 %v353
    %608 = vmatmul.mubr.bf16.gmra.mxu0 %v345
    %v609 = vpop.f32.mrf.mxu0
    %v610 = vadd.f32 %v415, %v609
    %v611 = vpop.f32.mrf.mxu0
    %v612 = vpop.f32.mrf.mxu0
    %v613 = vadd.f32 %v415, %v612
    %v614 = vpop.f32.mrf.mxu0
    %615 = vmatprep.mubr.bf16.mxu0 %v357
    %616 = vmatmul.mubr.bf16.gmra.mxu0 %v349
    %v617 = vpop.f32.mrf.mxu0
    %v618 = vadd.f32 %v415, %v617
    %v619 = vpop.f32.mrf.mxu0
    %v620 = vpop.f32.mrf.mxu0
    %v621 = vadd.f32 %v415, %v620
    %v622 = vpop.f32.mrf.mxu0
    %623 = vmatprep.mubr.bf16.mxu0 %v361
    %624 = vmatmul.mubr.bf16.gmra.mxu0 %v353
    %v625 = vpop.f32.mrf.mxu0
    %v626 = vadd.f32 %v415, %v625
    %v627 = vpop.f32.mrf.mxu0
    %v628 = vpop.f32.mrf.mxu0
    %v629 = vadd.f32 %v415, %v628
    %v630 = vpop.f32.mrf.mxu0
    %631 = vmatprep.mubr.bf16.mxu0 %v365
    %632 = vmatmul.mubr.bf16.gmra.mxu0 %v357
    %v633 = vpop.f32.mrf.mxu0
    %v634 = vadd.f32 %v415, %v633
    %v635 = vpop.f32.mrf.mxu0
    %v636 = vpop.f32.mrf.mxu0
    %v637 = vadd.f32 %v415, %v636
    %v638 = vpop.f32.mrf.mxu0
    %639 = vmatprep.mubr.bf16.mxu0 %v368
    %640 = vmatmul.mubr.bf16.gmra.mxu0 %v361
    %v641 = vpop.f32.mrf.mxu0
    %v642 = vadd.f32 %v415, %v641
    %v643 = vpop.f32.mrf.mxu0
    %v644 = vpop.f32.mrf.mxu0
    %v645 = vadd.f32 %v415, %v644
    %v646 = vpop.f32.mrf.mxu0
    %647 = vdwg.mxu0
    %648 = vmatprep.subr.bf16.mxu0 0
    %649 = vmatpush1.bf16.msra.mxu0 0
    %650 = vmatprep.subr.bf16.mxu0 0
    %651 = vmatpush1.bf16.msra.mxu0 0
    %652 = vmatprep.subr.bf16.mxu0 0
    %653 = vmatpush1.bf16.msra.mxu0 0
    %654 = vmatprep.subr.bf16.mxu0 0
    %655 = vmatpush1.bf16.msra.mxu0 0
    %656 = vmatprep.subr.bf16.mxu0 0
    %657 = vmatpush1.bf16.msra.mxu0 %v516
    %658 = vmatprep.subr.bf16.mxu0 0
    %659 = vmatpush1.bf16.msra.mxu0 %v515
    %660 = vmatprep.subr.bf16.mxu0 0
    %661 = vmatpush1.bf16.msra.mxu0 %v514
    %662 = vmatprep.subr.bf16.mxu0 0
    %663 = vmatpush1.bf16.msra.mxu0 %v513
    %664 = vmatprep.subr.bf16.mxu0 0
    %665 = vmatpush2.bf16.msra.mxu0 0
    %666 = vmatprep.subr.bf16.mxu0 0
    %667 = vmatpush2.bf16.msra.mxu0 0
    %668 = vmatprep.subr.bf16.mxu0 0
    %669 = vmatpush2.bf16.msra.mxu0 0
    %670 = vmatprep.subr.bf16.mxu0 0
    %671 = vmatpush2.bf16.msra.mxu0 0
    %672 = vmatprep.subr.bf16.mxu0 0
    %673 = vmatpush2.bf16.msra.mxu0 0
    %674 = vmatprep.subr.bf16.mxu0 0
    %675 = vmatpush2.bf16.msra.mxu0 0
    %676 = vmatprep.subr.bf16.mxu0 0
    %677 = vmatpush2.bf16.msra.mxu0 0
    %678 = vmatprep.subr.bf16.mxu0 0
    %679 = vmatpush2.bf16.msra.mxu0 0
    %680 = vmatprep.mubr.bf16.mxu0 0
    %681 = vmatmul.mubr.bf16.gmra.mxu0 %v537
    %v682 = vpop.f32.mrf.mxu0
    %v683 = vadd.f32 %v586, %v682
    %v684 = vpop.f32.mrf.mxu0
    %v685 = vpop.f32.mrf.mxu0
    %v686 = vadd.f32 %v589, %v685
    %v687 = vpop.f32.mrf.mxu0
    %688 = vmatprep.mubr.bf16.mxu0 0
    %689 = vmatmul.mubr.bf16.gmra.mxu0 %v539
    %v690 = vpop.f32.mrf.mxu0
    %v691 = vadd.f32 %v594, %v690
    %v692 = vpop.f32.mrf.mxu0
    %v693 = vpop.f32.mrf.mxu0
    %v694 = vadd.f32 %v597, %v693
    %v695 = vpop.f32.mrf.mxu0
    %696 = vmatprep.mubr.bf16.mxu0 0
    %697 = vmatmul.mubr.bf16.gmra.mxu0 %v541
    %v698 = vpop.f32.mrf.mxu0
    %v699 = vadd.f32 %v602, %v698
    %v700 = vpop.f32.mrf.mxu0
    %v701 = vpop.f32.mrf.mxu0
    %v702 = vadd.f32 %v605, %v701
    %v703 = vpop.f32.mrf.mxu0
    %704 = vmatprep.mubr.bf16.mxu0 0
    %705 = vmatmul.mubr.bf16.gmra.mxu0 %v543
    %v706 = vpop.f32.mrf.mxu0
    %v707 = vadd.f32 %v610, %v706
    %v708 = vpop.f32.mrf.mxu0
    %v709 = vpop.f32.mrf.mxu0
    %v710 = vadd.f32 %v613, %v709
    %v711 = vpop.f32.mrf.mxu0
    %712 = vmatprep.mubr.bf16.mxu0 0
    %713 = vmatmul.mubr.bf16.gmra.mxu0 %v545
    %v714 = vpop.f32.mrf.mxu0
    %v715 = vadd.f32 %v618, %v714
    %v716 = vpop.f32.mrf.mxu0
    %v717 = vpop.f32.mrf.mxu0
    %v718 = vadd.f32 %v621, %v717
    %v719 = vpop.f32.mrf.mxu0
    %720 = vmatprep.mubr.bf16.mxu0 0
    %721 = vmatmul.mubr.bf16.gmra.mxu0 %v547
    %v722 = vpop.f32.mrf.mxu0
    %v723 = vadd.f32 %v626, %v722
    %v724 = vpop.f32.mrf.mxu0
    %v725 = vpop.f32.mrf.mxu0
    %v726 = vadd.f32 %v629, %v725
    %v727 = vpop.f32.mrf.mxu0
    %728 = vmatprep.mubr.bf16.mxu0 0
    %729 = vmatmul.mubr.bf16.gmra.mxu0 %v549
    %v730 = vpop.f32.mrf.mxu0
    %v731 = vadd.f32 %v634, %v730
    %v732 = vpop.f32.mrf.mxu0
    %v733 = vpop.f32.mrf.mxu0
    %v734 = vadd.f32 %v637, %v733
    %v735 = vpop.f32.mrf.mxu0
    %736 = vmatprep.mubr.bf16.mxu0 0
    %737 = vmatmul.mubr.bf16.gmra.mxu0 %v549
    %v738 = vpop.f32.mrf.mxu0
    %v739 = vadd.f32 %v642, %v738
    %v740 = vpop.f32.mrf.mxu0
    %v741 = vpop.f32.mrf.mxu0
    %v742 = vadd.f32 %v645, %v741
    %v743 = vpop.f32.mrf.mxu0
    %744 = vdwg.mxu0
    %vm745 = vcmp.gt.f32.partialorder %v683, 0.0
    %vm746 = vcmp.gt.f32.partialorder %v686, 0.0
    %vm747 = vcmp.gt.f32.partialorder %v691, 0.0
    %vm748 = vcmp.gt.f32.partialorder %v694, 0.0
    %vm749 = vcmp.gt.f32.partialorder %v699, 0.0
    %vm750 = vcmp.gt.f32.partialorder %v702, 0.0
    %vm751 = vcmp.gt.f32.partialorder %v707, 0.0
    %vm752 = vcmp.gt.f32.partialorder %v710, 0.0
    %vm753 = vcmp.gt.f32.partialorder %v715, 0.0
    %vm754 = vcmp.gt.f32.partialorder %v718, 0.0
    %vm755 = vcmp.gt.f32.partialorder %v723, 0.0
    %vm756 = vcmp.gt.f32.partialorder %v726, 0.0
    %vm757 = vcmp.gt.f32.partialorder %v731, 0.0
    %vm758 = vcmp.gt.f32.partialorder %v734, 0.0
    %vm759 = vcmp.gt.f32.partialorder %v739, 0.0
    %vm760 = vcmp.gt.f32.partialorder %v742, 0.0
    %v761 = vmul.f32 %v683, 0.01
    %v762 = vmul.f32 %v686, 0.01
    %v763 = vmul.f32 %v691, 0.01
    %v764 = vmul.f32 %v694, 0.01
    %v765 = vmul.f32 %v699, 0.01
    %v766 = vmul.f32 %v702, 0.01
    %v767 = vmul.f32 %v707, 0.01
    %v768 = vmul.f32 %v710, 0.01
    %v769 = vmul.f32 %v715, 0.01
    %v770 = vmul.f32 %v718, 0.01
    %v771 = vmul.f32 %v723, 0.01
    %v772 = vmul.f32 %v726, 0.01
    %v773 = vmul.f32 %v731, 0.01
    %v774 = vmul.f32 %v734, 0.01
    %v775 = vmul.f32 %v739, 0.01
    %v776 = vmul.f32 %v742, 0.01
    %v777 = vsel %vm745, %v683, %v761
    %v778 = vsel %vm746, %v686, %v762
    %v779 = vsel %vm747, %v691, %v763
    %v780 = vsel %vm748, %v694, %v764
    %v781 = vsel %vm749, %v699, %v765
    %v782 = vsel %vm750, %v702, %v766
    %v783 = vsel %vm751, %v707, %v767
    %v784 = vsel %vm752, %v710, %v768
    %v785 = vsel %vm753, %v715, %v769
    %v786 = vsel %vm754, %v718, %v770
    %v787 = vsel %vm755, %v723, %v771
    %v788 = vsel %vm756, %v726, %v772
    %v789 = vsel %vm757, %v731, %v773
    %v790 = vsel %vm758, %v734, %v774
    %v791 = vsel %vm759, %v739, %v775
    %v792 = vsel %vm760, %v742, %v776
    %v793 = vmax.f32 %v777, %v779
    %v794 = vmax.f32 %v778, %v780
    %v795 = vmax.f32 %v781, %v783
    %v796 = vmax.f32 %v782, %v784
    %v797 = vmax.f32 %v785, %v787
    %v798 = vmax.f32 %v786, %v788
    %v799 = vmax.f32 %v789, %v791
    %v800 = vmax.f32 %v790, %v792
    %809 = vrot.lane.b32.xlu0 %v793, 120
    %v810 = vpop.permute.xlu0 %809
    %811 = vrot.lane.b32.xlu0 %v794, 120
    %v812 = vpop.permute.xlu0 %811
    %813 = vrot.lane.b32.xlu0 %v795, 120
    %v814 = vpop.permute.xlu0 %813
    %815 = vrot.lane.b32.xlu0 %v796, 120
    %v816 = vpop.permute.xlu0 %815
    %817 = vrot.lane.b32.xlu0 %v797, 120
    %v818 = vpop.permute.xlu0 %817
    %819 = vrot.lane.b32.xlu0 %v798, 120
    %v820 = vpop.permute.xlu0 %819
    %821 = vrot.lane.b32.xlu0 %v799, 120
    %v822 = vpop.permute.xlu0 %821
    %823 = vrot.lane.b32.xlu0 %v800, 120
    %v824 = vpop.permute.xlu0 %823
    %v833 = vmax.f32 %v793, %v810
    %v834 = vmax.f32 %v794, %v812
    %v835 = vmax.f32 %v795, %v814
    %v836 = vmax.f32 %v796, %v816
    %v837 = vmax.f32 %v797, %v818
    %v838 = vmax.f32 %v798, %v820
    %v839 = vmax.f32 %v799, %v822
    %v840 = vmax.f32 %v800, %v824
    %v841 = vpack.c.bf16 %v834, %v833
    %v842 = vpack.c.bf16 %v836, %v835
    %v843 = vpack.c.bf16 %v838, %v837
    %v844 = vpack.c.bf16 %v840, %v839
    %v845 = vld [vmem:[%s6] sm:$0x1]
    %v847 = vlaneseq
    %v848 = vshrl.u32 %v847, 7
    %v849 = vsub.s32 0, %v848
    %v850 = vrot.slane %v845, %v849
    %v852 = vadd.f32 %v850, 0.0
    %v853 = vld [vmem:[%s5] sm:$0xf]
    %v854 = vld [vmem:[%s5 + $0x4] sm:$0xf]
    %v855 = vld [vmem:[%s5 + $0x8] sm:$0xf]
    %v856 = vld [vmem:[%s5 + $0xc] sm:$0xf]
    %v857 = vld [vmem:[%s5 + $0x10] sm:$0xf]
    %v858 = vld [vmem:[%s5 + $0x14] sm:$0xf]
    %v859 = vld [vmem:[%s5 + $0x18] sm:$0xf]
    %v867 = vunpack.c.l.b16 %v853
    %v868 = vunpack.c.l.b16 %v854
    %v869 = vunpack.c.l.b16 %v855
    %v870 = vunpack.c.l.b16 %v856
    %v871 = vunpack.c.l.b16 %v857
    %v872 = vunpack.c.l.b16 %v858
    %v873 = vunpack.c.l.b16 %v859
    %v874 = vpack.c.b16 %v868, %v867
    %v875 = vpack.c.b16 %v870, %v869
    %v876 = vpack.c.b16 %v872, %v871
    %v877 = vpack.c.b16 %v873, %v873
    %vm881 = vcmask 457728
    %v883 = vsel %vm881, %v841, 0
    %vm885 = vcmask 1043456
    %v887 = vsel %vm885, %v877, 0
    %889 = vmatprep.subr.bf16.mxu0 0
    %890 = vmatpush1.bf16.msra.mxu0 0
    %891 = vmatprep.subr.bf16.mxu0 0
    %892 = vmatpush1.bf16.msra.mxu0 0
    %893 = vmatprep.subr.bf16.mxu0 0
    %894 = vmatpush1.bf16.msra.mxu0 0
    %895 = vmatprep.subr.bf16.mxu0 0
    %896 = vmatpush1.bf16.msra.mxu0 0
    %897 = vmatprep.subr.bf16.mxu0 0
    %898 = vmatpush1.bf16.msra.mxu0 %v887
    %899 = vmatprep.subr.bf16.mxu0 0
    %900 = vmatpush1.bf16.msra.mxu0 %v876
    %901 = vmatprep.subr.bf16.mxu0 0
    %902 = vmatpush1.bf16.msra.mxu0 %v875
    %903 = vmatprep.subr.bf16.mxu0 0
    %904 = vmatpush1.bf16.msra.mxu0 %v874
    %905 = vmatprep.subr.bf16.mxu0 0
    %906 = vmatpush2.bf16.msra.mxu0 0
    %907 = vmatprep.subr.bf16.mxu0 0
    %908 = vmatpush2.bf16.msra.mxu0 0
    %909 = vmatprep.subr.bf16.mxu0 0
    %910 = vmatpush2.bf16.msra.mxu0 0
    %911 = vmatprep.subr.bf16.mxu0 0
    %912 = vmatpush2.bf16.msra.mxu0 0
    %913 = vmatprep.subr.bf16.mxu0 0
    %914 = vmatpush2.bf16.msra.mxu0 0
    %915 = vmatprep.subr.bf16.mxu0 0
    %916 = vmatpush2.bf16.msra.mxu0 0
    %917 = vmatprep.subr.bf16.mxu0 0
    %918 = vmatpush2.bf16.msra.mxu0 0
    %919 = vmatprep.subr.bf16.mxu0 0
    %920 = vmatpush2.bf16.msra.mxu0 0
    %921 = vmatprep.mubr.bf16.mxu0 0
    %922 = vmatmul.mubr.bf16.gmra.mxu0 %v883
    %v923 = vpop.f32.mrf.mxu0
    %v924 = vadd.f32 0.0, %v923
    %v925 = vpop.f32.mrf.mxu0
    %v926 = vpop.f32.mrf.mxu0
    %v927 = vadd.f32 0.0, %v926
    %v928 = vpop.f32.mrf.mxu0
    %929 = vdwg.mxu0
    %v930 = vadd.f32 %v852, %v924
    %v931 = vadd.f32 %v852, %v927
    %s932 = scalar_lea.vmem %s5, 28
    %v933 = vld [vmem:[%s932] sm:$0xf]
    %v934 = vld [vmem:[%s932 + $0x4] sm:$0xf]
    %v935 = vld [vmem:[%s932 + $0x8] sm:$0xf]
    %v936 = vld [vmem:[%s932 + $0xc] sm:$0xf]
    %v937 = vld [vmem:[%s932 + $0x10] sm:$0xf]
    %v938 = vld [vmem:[%s932 + $0x14] sm:$0xf]
    %v939 = vld [vmem:[%s932 + $0x18] sm:$0xf]
    %v947 = vunpack.c.l.b16 %v933
    %v948 = vunpack.c.l.b16 %v934
    %v949 = vunpack.c.l.b16 %v935
    %v950 = vunpack.c.l.b16 %v936
    %v951 = vunpack.c.l.b16 %v937
    %v952 = vunpack.c.l.b16 %v938
    %v953 = vunpack.c.l.b16 %v939
    %v954 = vpack.c.b16 %v948, %v947
    %v955 = vpack.c.b16 %v950, %v949
    %v956 = vpack.c.b16 %v952, %v951
    %v957 = vpack.c.b16 %v953, %v953
    %v962 = vsel %vm881, %v842, 0
    %v965 = vsel %vm885, %v957, 0
    %967 = vmatprep.subr.bf16.mxu0 0
    %968 = vmatpush1.bf16.msra.mxu0 0
    %969 = vmatprep.subr.bf16.mxu0 0
    %970 = vmatpush1.bf16.msra.mxu0 0
    %971 = vmatprep.subr.bf16.mxu0 0
    %972 = vmatpush1.bf16.msra.mxu0 0
    %973 = vmatprep.subr.bf16.mxu0 0
    %974 = vmatpush1.bf16.msra.mxu0 0
    %975 = vmatprep.subr.bf16.mxu0 0
    %976 = vmatpush1.bf16.msra.mxu0 %v965
    %977 = vmatprep.subr.bf16.mxu0 0
    %978 = vmatpush1.bf16.msra.mxu0 %v956
    %979 = vmatprep.subr.bf16.mxu0 0
    %980 = vmatpush1.bf16.msra.mxu0 %v955
    %981 = vmatprep.subr.bf16.mxu0 0
    %982 = vmatpush1.bf16.msra.mxu0 %v954
    %983 = vmatprep.subr.bf16.mxu0 0
    %984 = vmatpush2.bf16.msra.mxu0 0
    %985 = vmatprep.subr.bf16.mxu0 0
    %986 = vmatpush2.bf16.msra.mxu0 0
    %987 = vmatprep.subr.bf16.mxu0 0
    %988 = vmatpush2.bf16.msra.mxu0 0
    %989 = vmatprep.subr.bf16.mxu0 0
    %990 = vmatpush2.bf16.msra.mxu0 0
    %991 = vmatprep.subr.bf16.mxu0 0
    %992 = vmatpush2.bf16.msra.mxu0 0
    %993 = vmatprep.subr.bf16.mxu0 0
    %994 = vmatpush2.bf16.msra.mxu0 0
    %995 = vmatprep.subr.bf16.mxu0 0
    %996 = vmatpush2.bf16.msra.mxu0 0
    %997 = vmatprep.subr.bf16.mxu0 0
    %998 = vmatpush2.bf16.msra.mxu0 0
    %999 = vmatprep.mubr.bf16.mxu0 0
    %1000 = vmatmul.mubr.bf16.gmra.mxu0 %v962
    %v1001 = vpop.f32.mrf.mxu0
    %v1002 = vadd.f32 0.0, %v1001
    %v1003 = vpop.f32.mrf.mxu0
    %v1004 = vpop.f32.mrf.mxu0
    %v1005 = vadd.f32 0.0, %v1004
    %v1006 = vpop.f32.mrf.mxu0
    %1007 = vdwg.mxu0
    %v1008 = vadd.f32 %v930, %v1002
    %v1009 = vadd.f32 %v931, %v1005
    %s1010 = scalar_lea.vmem %s5, 56
    %v1011 = vld [vmem:[%s1010] sm:$0xf]
    %v1012 = vld [vmem:[%s1010 + $0x4] sm:$0xf]
    %v1013 = vld [vmem:[%s1010 + $0x8] sm:$0xf]
    %v1014 = vld [vmem:[%s1010 + $0xc] sm:$0xf]
    %v1015 = vld [vmem:[%s1010 + $0x10] sm:$0xf]
    %v1016 = vld [vmem:[%s1010 + $0x14] sm:$0xf]
    %v1017 = vld [vmem:[%s1010 + $0x18] sm:$0xf]
    %v1025 = vunpack.c.l.b16 %v1011
    %v1026 = vunpack.c.l.b16 %v1012
    %v1027 = vunpack.c.l.b16 %v1013
    %v1028 = vunpack.c.l.b16 %v1014
    %v1029 = vunpack.c.l.b16 %v1015
    %v1030 = vunpack.c.l.b16 %v1016
    %v1031 = vunpack.c.l.b16 %v1017
    %v1032 = vpack.c.b16 %v1026, %v1025
    %v1033 = vpack.c.b16 %v1028, %v1027
    %v1034 = vpack.c.b16 %v1030, %v1029
    %v1035 = vpack.c.b16 %v1031, %v1031
    %v1040 = vsel %vm881, %v843, 0
    %v1043 = vsel %vm885, %v1035, 0
    %1045 = vmatprep.subr.bf16.mxu0 0
    %1046 = vmatpush1.bf16.msra.mxu0 0
    %1047 = vmatprep.subr.bf16.mxu0 0
    %1048 = vmatpush1.bf16.msra.mxu0 0
    %1049 = vmatprep.subr.bf16.mxu0 0
    %1050 = vmatpush1.bf16.msra.mxu0 0
    %1051 = vmatprep.subr.bf16.mxu0 0
    %1052 = vmatpush1.bf16.msra.mxu0 0
    %1053 = vmatprep.subr.bf16.mxu0 0
    %1054 = vmatpush1.bf16.msra.mxu0 %v1043
    %1055 = vmatprep.subr.bf16.mxu0 0
    %1056 = vmatpush1.bf16.msra.mxu0 %v1034
    %1057 = vmatprep.subr.bf16.mxu0 0
    %1058 = vmatpush1.bf16.msra.mxu0 %v1033
    %1059 = vmatprep.subr.bf16.mxu0 0
    %1060 = vmatpush1.bf16.msra.mxu0 %v1032
    %1061 = vmatprep.subr.bf16.mxu0 0
    %1062 = vmatpush2.bf16.msra.mxu0 0
    %1063 = vmatprep.subr.bf16.mxu0 0
    %1064 = vmatpush2.bf16.msra.mxu0 0
    %1065 = vmatprep.subr.bf16.mxu0 0
    %1066 = vmatpush2.bf16.msra.mxu0 0
    %1067 = vmatprep.subr.bf16.mxu0 0
    %1068 = vmatpush2.bf16.msra.mxu0 0
    %1069 = vmatprep.subr.bf16.mxu0 0
    %1070 = vmatpush2.bf16.msra.mxu0 0
    %1071 = vmatprep.subr.bf16.mxu0 0
    %1072 = vmatpush2.bf16.msra.mxu0 0
    %1073 = vmatprep.subr.bf16.mxu0 0
    %1074 = vmatpush2.bf16.msra.mxu0 0
    %1075 = vmatprep.subr.bf16.mxu0 0
    %1076 = vmatpush2.bf16.msra.mxu0 0
    %1077 = vmatprep.mubr.bf16.mxu0 0
    %1078 = vmatmul.mubr.bf16.gmra.mxu0 %v1040
    %v1079 = vpop.f32.mrf.mxu0
    %v1080 = vadd.f32 0.0, %v1079
    %v1081 = vpop.f32.mrf.mxu0
    %v1082 = vpop.f32.mrf.mxu0
    %v1083 = vadd.f32 0.0, %v1082
    %v1084 = vpop.f32.mrf.mxu0
    %1085 = vdwg.mxu0
    %v1086 = vadd.f32 %v1008, %v1080
    %v1087 = vadd.f32 %v1009, %v1083
    %s1088 = scalar_lea.vmem %s5, 84
    %v1089 = vld [vmem:[%s1088] sm:$0xf]
    %v1090 = vld [vmem:[%s1088 + $0x4] sm:$0xf]
    %v1091 = vld [vmem:[%s1088 + $0x8] sm:$0xf]
    %v1092 = vld [vmem:[%s1088 + $0xc] sm:$0xf]
    %v1093 = vld [vmem:[%s1088 + $0x10] sm:$0xf]
    %v1094 = vld [vmem:[%s1088 + $0x14] sm:$0xf]
    %v1095 = vld [vmem:[%s1088 + $0x18] sm:$0xf]
    %v1103 = vunpack.c.l.b16 %v1089
    %v1104 = vunpack.c.l.b16 %v1090
    %v1105 = vunpack.c.l.b16 %v1091
    %v1106 = vunpack.c.l.b16 %v1092
    %v1107 = vunpack.c.l.b16 %v1093
    %v1108 = vunpack.c.l.b16 %v1094
    %v1109 = vunpack.c.l.b16 %v1095
    %v1110 = vpack.c.b16 %v1104, %v1103
    %v1111 = vpack.c.b16 %v1106, %v1105
    %v1112 = vpack.c.b16 %v1108, %v1107
    %v1113 = vpack.c.b16 %v1109, %v1109
    %v1118 = vsel %vm881, %v844, 0
    %v1121 = vsel %vm885, %v1113, 0
    %1123 = vmatprep.subr.bf16.mxu0 0
    %1124 = vmatpush1.bf16.msra.mxu0 0
    %1125 = vmatprep.subr.bf16.mxu0 0
    %1126 = vmatpush1.bf16.msra.mxu0 0
    %1127 = vmatprep.subr.bf16.mxu0 0
    %1128 = vmatpush1.bf16.msra.mxu0 0
    %1129 = vmatprep.subr.bf16.mxu0 0
    %1130 = vmatpush1.bf16.msra.mxu0 0
    %1131 = vmatprep.subr.bf16.mxu0 0
    %1132 = vmatpush1.bf16.msra.mxu0 %v1121
    %1133 = vmatprep.subr.bf16.mxu0 0
    %1134 = vmatpush1.bf16.msra.mxu0 %v1112
    %1135 = vmatprep.subr.bf16.mxu0 0
    %1136 = vmatpush1.bf16.msra.mxu0 %v1111
    %1137 = vmatprep.subr.bf16.mxu0 0
    %1138 = vmatpush1.bf16.msra.mxu0 %v1110
    %1139 = vmatprep.subr.bf16.mxu0 0
    %1140 = vmatpush2.bf16.msra.mxu0 0
    %1141 = vmatprep.subr.bf16.mxu0 0
    %1142 = vmatpush2.bf16.msra.mxu0 0
    %1143 = vmatprep.subr.bf16.mxu0 0
    %1144 = vmatpush2.bf16.msra.mxu0 0
    %1145 = vmatprep.subr.bf16.mxu0 0
    %1146 = vmatpush2.bf16.msra.mxu0 0
    %1147 = vmatprep.subr.bf16.mxu0 0
    %1148 = vmatpush2.bf16.msra.mxu0 0
    %1149 = vmatprep.subr.bf16.mxu0 0
    %1150 = vmatpush2.bf16.msra.mxu0 0
    %1151 = vmatprep.subr.bf16.mxu0 0
    %1152 = vmatpush2.bf16.msra.mxu0 0
    %1153 = vmatprep.subr.bf16.mxu0 0
    %1154 = vmatpush2.bf16.msra.mxu0 0
    %1155 = vmatprep.mubr.bf16.mxu0 0
    %1156 = vmatmul.mubr.bf16.gmra.mxu0 %v1118
    %v1157 = vpop.f32.mrf.mxu0
    %v1158 = vadd.f32 0.0, %v1157
    %v1159 = vpop.f32.mrf.mxu0
    %v1160 = vpop.f32.mrf.mxu0
    %v1161 = vadd.f32 0.0, %v1160
    %v1162 = vpop.f32.mrf.mxu0
    %1163 = vdwg.mxu0
    %v1164 = vadd.f32 %v1086, %v1158
    %v1165 = vadd.f32 %v1087, %v1161
    %1166 = vst [vmem:[#allocation2] sm:$0xff] %v1164
    %1167 = vst [vmem:[#allocation2 + $0x8] sm:$0xff] %v1165
    // Predicated region
    $region30: #{net_forward.1} parent=1 // pred_check
      _
    $region31: #{net_forward.1} parent=1 // pred_check_branch
      %1169 = sbr.rel (0) target = $region33
    $region32: #{net_forward.1} parent=1 // pred_region
      %s1171 = ssub.s32 256, 256
      %1172 = vsyncadd [#allocation3], %s1171
      %s1173 = sshll.u32 [#allocation2], 4
      %s1174 = int_to_ptr.vmem [resolvable:$true] %s1173
      %1179 = dma.vmem_to_hbm [thread:$0]  %s1174, 256, %s7, [#allocation3], 128, 128, 8
    $region33: #{net_forward.1} parent=1 // pred_fallthru
      _
    // Predicated region
    $region34: #{net_forward.1} parent=1 // pred_check
      _
    $region35: #{net_forward.1} parent=1 // pred_check_branch
      %1181 = sbr.rel (0) target = $region37
    $region36: #{net_forward.1} parent=1 // pred_region
      %1182 = dma.done [#allocation3], 256
    $region37: #{net_forward.1} parent=1 // pred_fallthru
      _
    %1183 = vsyncpa [#allocation3], 1

</llo_original>
